<compile_context>
chip_gen: v6e
topology: v6e:2x2x1
jax: 0.10.0
libtpu: 0.0.40
codegen_flags: <defaults>
</compile_context>

<pallas_src>
import jax
import jax.numpy as jnp
from jax import lax
from jax.experimental import pallas as pl
from jax.experimental.pallas import tpu as pltpu

BN_EPS = 1e-5


def basic_block_1d_kernel(x_ref, w1_ref, w2_ref, g1_ref, b1_ref, g2_ref,
                          b2_ref, o_ref, stk_ref):
    B, c_in, L = x_ref.shape
    cdt = stk_ref.dtype                       # MXU operand dtype (f32 or bf16)

    # ---- hoisted sequence-edge masks: built once, reused by both convs ----
    # One L-length lane row; no per-conv full-size iota, no integer modulo.
    pos = lax.broadcasted_iota(jnp.int32, (1, L), 1)
    lmask = (pos != 0).astype(jnp.float32)        # zero the x[l-1] tap at l==0
    rmask = (pos != L - 1).astype(jnp.float32)    # zero the x[l+1] tap at l==L-1

    def conv3(x, w_flat):
        """3-tap 1D conv, stride=1, pad=1, no bias.

        x: (B, c, L) f32; w_flat: (c_o, 3*c) with column k*c + cc == w[o, cc, k].
        """
        c = x.shape[1]
        c_o = w_flat.shape[0]
        # Rolls on a 2D (B*c, L) view: each row is one full sequence, so the
        # wrap never crosses a batch boundary; the multiplicative mask supplies
        # the zero padding.  (Reshapes are free when c % 8 == 0.)
        x2 = x.reshape(B * c, L)
        left = pltpu.roll(x2, shift=1, axis=1) * lmask           # x[l-1]
        right = pltpu.roll(x2, shift=L - 1, axis=1) * rmask      # x[l+1]
        # Build the (B, 3c, L) tap stack in the shared VMEM scratch buffer via
        # sublane-aligned static slices (no concatenate value materialized).
        stk_ref[:, 0:c, :] = left.reshape(B, c, L).astype(cdt)
        stk_ref[:, c:2 * c, :] = x.astype(cdt)
        stk_ref[:, 2 * c:3 * c, :] = right.reshape(B, c, L).astype(cdt)
        stacked = stk_ref[:, 0:3 * c, :]                         # (B, 3c, L)
        # One batched MXU matmul per conv (taps folded into the contraction),
        # always accumulating in f32.
        w_b = jnp.broadcast_to(w_flat, (B, c_o, 3 * c))
        return lax.dot_general(
            w_b, stacked,
            dimension_numbers=(((2,), (1,)), ((0,), (0,))),
            preferred_element_type=jnp.float32)                  # (B, c_o, L)

    def bn_relu(y, gamma, beta):
        """Training-mode BatchNorm1d (batch stats over (B, L), biased variance)
        + ReLU, with a two-pass centered variance for numerical robustness.
        BN/ReLU elementwise math stays in f32 on all chip generations."""
        inv_n = 1.0 / (y.shape[0] * y.shape[2])
        mean = jnp.sum(jnp.sum(y, axis=2, keepdims=True),
                       axis=0, keepdims=True) * inv_n            # (1, c, 1)
        d = y - mean
        var = jnp.sum(jnp.sum(d * d, axis=2, keepdims=True),
                      axis=0, keepdims=True) * inv_n             # biased var
        scale = gamma * lax.rsqrt(var + BN_EPS)                  # (1, c, 1)
        return jnp.maximum(d * scale + beta, 0.0)

    y = conv3(x_ref[...].astype(jnp.float32), w1_ref[...])       # conv1
    y = bn_relu(y, g1_ref[...], b1_ref[...])                     # bn1 + relu
    y = conv3(y, w2_ref[...])                                    # conv2
    y = bn_relu(y, g2_ref[...], b2_ref[...])                     # bn2 + relu
    o_ref[...] = y.astype(o_ref.dtype)


def basic_block_1d(x, w1, w2, g1, b1, g2, b2, *, use_bf16_matmul=False):
    """x: (B, inplanes, L); conv weights (C_out, C_in, 3); gamma/beta (C_out,).

    Returns (B, planes, L) float32 (native PyTorch NCL layout in and out: no
    HBM relayout on either side).  Best perf when L % 128 == 0 (lane-dense
    stores) and the channel counts are multiples of 8 (sublane-aligned, free
    reshapes); other shapes are still correct, just slower.
    """
    B, c_in, L = x.shape
    c_out = w1.shape[0]
    cdt = jnp.bfloat16 if use_bf16_matmul else jnp.float32

    # Weight layout (C_out, C_in, 3) -> (C_out, 3*C_in), column = k*C_in + c,
    # matching the [x[l-1]; x[l]; x[l+1]] tap-stack order.  Pre-cast to the MXU
    # operand dtype here (tiny tensors; avoids per-call in-kernel weight casts).
    w1_f = jnp.transpose(w1, (0, 2, 1)).reshape(c_out, 3 * c_in).astype(cdt)
    w2_f = jnp.transpose(w2, (0, 2, 1)).reshape(c_out, 3 * c_out).astype(cdt)
    g1_c = g1.reshape(c_out, 1).astype(jnp.float32)
    b1_c = b1.reshape(c_out, 1).astype(jnp.float32)
    g2_c = g2.reshape(c_out, 1).astype(jnp.float32)
    b2_c = b2.reshape(c_out, 1).astype(jnp.float32)

    itemsize = jnp.dtype(cdt).itemsize
    flops = 2 * B * L * (3 * c_in * c_out + 3 * c_out * c_out) \
        + 12 * B * L * c_out
    bytes_accessed = 4 * B * L * (c_in + c_out) \
        + itemsize * (3 * c_in * c_out + 3 * c_out * c_out) + 16 * c_out
    cost = pl.CostEstimate(flops=flops, transcendentals=2 * c_out,
                           bytes_accessed=bytes_accessed)

    vmem = pl.BlockSpec(memory_space=pltpu.MemorySpace.VMEM)
    return pl.pallas_call(
        basic_block_1d_kernel,
        out_shape=jax.ShapeDtypeStruct((B, c_out, L), jnp.float32),
        in_specs=[vmem] * 7,
        out_specs=vmem,
        # One shared tap-stack scratch, reused by both convs.
        scratch_shapes=[pltpu.VMEM((B, 3 * max(c_in, c_out), L), cdt)],
        cost_estimate=cost,
        compiler_params=pltpu.CompilerParams(
            # 32 MiB keeps us inside v7x's 64 MiB physical VMEM as well as
            # v5e/v6e's 128 MiB; re-derive when adding the production grid.
            vmem_limit_bytes=32 * 1024 * 1024),
    )(x, w1_f, w2_f, g1_c, b1_c, g2_c, b2_c)


# ---------------- plain-JAX reference (for correctness check) ----------------
def _ref_forward(x, w1, w2, g1, b1, g2, b2):
    def conv(x, w):
        return lax.conv_general_dilated(
            x, w, window_strides=(1,), padding=[(1, 1)],
            dimension_numbers=("NCH", "OIH", "NCH"))

    def bn_relu(y, g, b):
        m = y.mean(axis=(0, 2), keepdims=True)
        v = ((y - m) ** 2).mean(axis=(0, 2), keepdims=True)
        return jnp.maximum((y - m) / jnp.sqrt(v + BN_EPS)
                           * g.reshape(1, -1, 1) + b.reshape(1, -1, 1), 0.0)

    y = bn_relu(conv(x, w1), g1, b1)
    return bn_relu(conv(y, w2), g2, b2)


if __name__ == "__main__":
    B, inplanes, planes, L = 2, 8, 16, 128

    key = jax.random.PRNGKey(0)
    kx, kw1, kw2, kg1, kb1, kg2, kb2 = jax.random.split(key, 7)

    x = jax.random.normal(kx, (B, inplanes, L), jnp.float32)
    # Conv1d weights: (out_channels, in_channels, kernel_size=3), no bias.
    w1 = 0.1 * jax.random.normal(kw1, (planes, inplanes, 3), jnp.float32)
    w2 = 0.1 * jax.random.normal(kw2, (planes, planes, 3), jnp.float32)
    # BatchNorm1d affine params, shape (C,) as in PyTorch.
    g1 = 1.0 + 0.1 * jax.random.normal(kg1, (planes,), jnp.float32)
    b1 = 0.1 * jax.random.normal(kb1, (planes,), jnp.float32)
    g2 = 1.0 + 0.1 * jax.random.normal(kg2, (planes,), jnp.float32)
    b2 = 0.1 * jax.random.normal(kb2, (planes,), jnp.float32)

    ref = jax.block_until_ready(_ref_forward(x, w1, w2, g1, b1, g2, b2))

    # Default f32 MXU path: matches PyTorch numerics tightly.
    out = jax.block_until_ready(basic_block_1d(x, w1, w2, g1, b1, g2, b2))
    assert out.shape == (B, planes, L)
    max_err = float(jnp.max(jnp.abs(out - ref)))
    assert jnp.allclose(out, ref, atol=2e-4, rtol=2e-4), max_err

    # bf16-operand MXU path (v6e/v7x recommendation), f32 accumulation.
    out_bf16 = jax.block_until_ready(
        basic_block_1d(x, w1, w2, g1, b1, g2, b2, use_bf16_matmul=True))
    assert bool(jnp.all(jnp.isfinite(out_bf16)))
    max_err_bf16 = float(jnp.max(jnp.abs(out_bf16 - ref)))
    assert jnp.allclose(out_bf16, ref, atol=1e-1, rtol=1e-1), max_err_bf16

    print("KERNEL_OK")
</pallas_src>

<mosaic_0001>
module attributes {stable_mosaic.version = 11 : i64} {
  func.func @basic_block_1d_kernel(%arg0: memref<2x8x128xf32, #tpu.memory_space<vmem>>, %arg1: memref<16x24xf32, #tpu.memory_space<vmem>>, %arg2: memref<16x48xf32, #tpu.memory_space<vmem>>, %arg3: memref<16x1xf32, #tpu.memory_space<vmem>>, %arg4: memref<16x1xf32, #tpu.memory_space<vmem>>, %arg5: memref<16x1xf32, #tpu.memory_space<vmem>>, %arg6: memref<16x1xf32, #tpu.memory_space<vmem>>, %arg7: memref<2x16x128xf32, #tpu.memory_space<vmem>>, %arg8: memref<2x48x128xf32, #tpu.memory_space<vmem>>) attributes {dimension_semantics = [], scalar_prefetch = 0 : i64, scratch_operands = 1 : i64, tpu.core_type = #tpu.core_type<tc>} {
    %0 = tpu.iota {dimensions = array<i32: 1>} : vector<1x128xi32>
    %c0_i32 = arith.constant 0 : i32
    %1 = vector.broadcast %c0_i32 : i32 to vector<1x128xi32>
    %2 = arith.cmpi ne, %0, %1 : vector<1x128xi32>
    %3 = arith.extui %2 : vector<1x128xi1> to vector<1x128xi32>
    %4 = arith.sitofp %3 : vector<1x128xi32> to vector<1x128xf32>
    %c127_i32 = arith.constant 127 : i32
    %5 = vector.broadcast %c127_i32 : i32 to vector<1x128xi32>
    %6 = arith.cmpi ne, %0, %5 : vector<1x128xi32>
    %7 = arith.extui %6 : vector<1x128xi1> to vector<1x128xi32>
    %8 = arith.sitofp %7 : vector<1x128xi32> to vector<1x128xf32>
    %c0 = arith.constant 0 : index
    %c0_0 = arith.constant 0 : index
    %c0_1 = arith.constant 0 : index
    %9 = vector.load %arg0[%c0, %c0_0, %c0_1] : memref<2x8x128xf32, #tpu.memory_space<vmem>>, vector<2x8x128xf32>
    %c0_2 = arith.constant 0 : index
    %c0_3 = arith.constant 0 : index
    %10 = vector.load %arg1[%c0_2, %c0_3] : memref<16x24xf32, #tpu.memory_space<vmem>>, vector<16x24xf32>
    %11 = vector.shape_cast %9 : vector<2x8x128xf32> to vector<16x128xf32>
    %c1_i32 = arith.constant 1 : i32
    %12 = tpu.dynamic_rotate %11 by %c1_i32 dim 1 : vector<16x128xf32>, i32 -> vector<16x128xf32>
    %13 = vector.broadcast %4 : vector<1x128xf32> to vector<16x128xf32>
    %14 = arith.mulf %12, %13 : vector<16x128xf32>
    %c127_i32_4 = arith.constant 127 : i32
    %15 = tpu.dynamic_rotate %11 by %c127_i32_4 dim 1 : vector<16x128xf32>, i32 -> vector<16x128xf32>
    %16 = vector.broadcast %8 : vector<1x128xf32> to vector<16x128xf32>
    %17 = arith.mulf %15, %16 : vector<16x128xf32>
    %18 = vector.shape_cast %14 : vector<16x128xf32> to vector<2x8x128xf32>
    %c0_5 = arith.constant 0 : index
    %c0_6 = arith.constant 0 : index
    %c0_7 = arith.constant 0 : index
    %19 = vector.load %arg8[%c0_5, %c0_6, %c0_7] : memref<2x48x128xf32, #tpu.memory_space<vmem>>, vector<2x8x128xf32>
    tpu.vector_store %arg8[%c0_5, %c0_6, %c0_7], %18 {strides = array<i32>} : memref<2x48x128xf32, #tpu.memory_space<vmem>>, vector<2x8x128xf32>,
    %c0_8 = arith.constant 0 : index
    %c8 = arith.constant 8 : index
    %c0_9 = arith.constant 0 : index
    %20 = vector.load %arg8[%c0_8, %c8, %c0_9] : memref<2x48x128xf32, #tpu.memory_space<vmem>>, vector<2x8x128xf32>
    tpu.vector_store %arg8[%c0_8, %c8, %c0_9], %9 {strides = array<i32>} : memref<2x48x128xf32, #tpu.memory_space<vmem>>, vector<2x8x128xf32>,
    %21 = vector.shape_cast %17 : vector<16x128xf32> to vector<2x8x128xf32>
    %c0_10 = arith.constant 0 : index
    %c16 = arith.constant 16 : index
    %c0_11 = arith.constant 0 : index
    %22 = vector.load %arg8[%c0_10, %c16, %c0_11] : memref<2x48x128xf32, #tpu.memory_space<vmem>>, vector<2x8x128xf32>
    tpu.vector_store %arg8[%c0_10, %c16, %c0_11], %21 {strides = array<i32>} : memref<2x48x128xf32, #tpu.memory_space<vmem>>, vector<2x8x128xf32>,
    %c0_12 = arith.constant 0 : index
    %c0_13 = arith.constant 0 : index
    %c0_14 = arith.constant 0 : index
    %23 = vector.load %arg8[%c0_12, %c0_13, %c0_14] : memref<2x48x128xf32, #tpu.memory_space<vmem>>, vector<2x24x128xf32>
    %24 = vector.shape_cast %10 : vector<16x24xf32> to vector<1x16x24xf32>
    %25 = vector.broadcast %24 : vector<1x16x24xf32> to vector<2x16x24xf32>
    %cst = arith.constant dense<0.000000e+00> : vector<2x16x128xf32>
    %26 = tpu.matmul %25, %23, %cst {dimension_numbers = #tpu.dot_dimension_numbers<[2], [1], [1], [2], [0, 0, 0, 1, 1, 2], [0], [0]>} : vector<2x16x24xf32>, vector<2x24x128xf32>, vector<2x16x128xf32> -> vector<2x16x128xf32>
    %c0_15 = arith.constant 0 : index
    %c0_16 = arith.constant 0 : index
    %27 = vector.load %arg3[%c0_15, %c0_16] : memref<16x1xf32, #tpu.memory_space<vmem>>, vector<16x1xf32>
    %c0_17 = arith.constant 0 : index
    %c0_18 = arith.constant 0 : index
    %28 = vector.load %arg4[%c0_17, %c0_18] : memref<16x1xf32, #tpu.memory_space<vmem>>, vector<16x1xf32>
    %cst_19 = arith.constant dense<0.000000e+00> : vector<2x16xf32>
    %29 = vector.multi_reduction <add>, %26, %cst_19 [2] : vector<2x16x128xf32> to vector<2x16xf32>
    %30 = vector.shape_cast %29 : vector<2x16xf32> to vector<2x16x1xf32>
    %cst_20 = arith.constant dense<0.000000e+00> : vector<16x1xf32>
    %31 = vector.multi_reduction <add>, %30, %cst_20 [0] : vector<2x16x1xf32> to vector<16x1xf32>
    %32 = vector.shape_cast %31 : vector<16x1xf32> to vector<1x16x1xf32>
    %cst_21 = arith.constant 3.906250e-03 : f32
    %33 = vector.broadcast %cst_21 : f32 to vector<1x16x1xf32>
    %34 = arith.mulf %32, %33 : vector<1x16x1xf32>
    %35 = vector.broadcast %34 : vector<1x16x1xf32> to vector<2x16x128xf32>
    %36 = arith.subf %26, %35 : vector<2x16x128xf32>
    %37 = arith.mulf %36, %36 : vector<2x16x128xf32>
    %cst_22 = arith.constant dense<0.000000e+00> : vector<2x16xf32>
    %38 = vector.multi_reduction <add>, %37, %cst_22 [2] : vector<2x16x128xf32> to vector<2x16xf32>
    %39 = vector.shape_cast %38 : vector<2x16xf32> to vector<2x16x1xf32>
    %cst_23 = arith.constant dense<0.000000e+00> : vector<16x1xf32>
    %40 = vector.multi_reduction <add>, %39, %cst_23 [0] : vector<2x16x1xf32> to vector<16x1xf32>
    %41 = vector.shape_cast %40 : vector<16x1xf32> to vector<1x16x1xf32>
    %cst_24 = arith.constant 3.906250e-03 : f32
    %42 = vector.broadcast %cst_24 : f32 to vector<1x16x1xf32>
    %43 = arith.mulf %41, %42 : vector<1x16x1xf32>
    %cst_25 = arith.constant 9.99999974E-6 : f32
    %44 = vector.broadcast %cst_25 : f32 to vector<1x16x1xf32>
    %45 = arith.addf %43, %44 : vector<1x16x1xf32>
    %46 = math.rsqrt %45 : vector<1x16x1xf32>
    %47 = vector.shape_cast %27 : vector<16x1xf32> to vector<1x16x1xf32>
    %48 = arith.mulf %47, %46 : vector<1x16x1xf32>
    %49 = vector.broadcast %48 : vector<1x16x1xf32> to vector<2x16x128xf32>
    %50 = arith.mulf %36, %49 : vector<2x16x128xf32>
    %51 = vector.shape_cast %28 : vector<16x1xf32> to vector<1x16x1xf32>
    %52 = vector.broadcast %51 : vector<1x16x1xf32> to vector<2x16x128xf32>
    %53 = arith.addf %50, %52 : vector<2x16x128xf32>
    %cst_26 = arith.constant 0.000000e+00 : f32
    %54 = vector.broadcast %cst_26 : f32 to vector<2x16x128xf32>
    %55 = arith.maximumf %53, %54 : vector<2x16x128xf32>
    %c0_27 = arith.constant 0 : index
    %c0_28 = arith.constant 0 : index
    %56 = vector.load %arg2[%c0_27, %c0_28] : memref<16x48xf32, #tpu.memory_space<vmem>>, vector<16x48xf32>
    %57 = vector.shape_cast %55 : vector<2x16x128xf32> to vector<32x128xf32>
    %c1_i32_29 = arith.constant 1 : i32
    %58 = tpu.dynamic_rotate %57 by %c1_i32_29 dim 1 : vector<32x128xf32>, i32 -> vector<32x128xf32>
    %59 = vector.broadcast %4 : vector<1x128xf32> to vector<32x128xf32>
    %60 = arith.mulf %58, %59 : vector<32x128xf32>
    %c127_i32_30 = arith.constant 127 : i32
    %61 = tpu.dynamic_rotate %57 by %c127_i32_30 dim 1 : vector<32x128xf32>, i32 -> vector<32x128xf32>
    %62 = vector.broadcast %8 : vector<1x128xf32> to vector<32x128xf32>
    %63 = arith.mulf %61, %62 : vector<32x128xf32>
    %64 = vector.shape_cast %60 : vector<32x128xf32> to vector<2x16x128xf32>
    %c0_31 = arith.constant 0 : index
    %c0_32 = arith.constant 0 : index
    %c0_33 = arith.constant 0 : index
    %65 = vector.load %arg8[%c0_31, %c0_32, %c0_33] : memref<2x48x128xf32, #tpu.memory_space<vmem>>, vector<2x16x128xf32>
    tpu.vector_store %arg8[%c0_31, %c0_32, %c0_33], %64 {strides = array<i32>} : memref<2x48x128xf32, #tpu.memory_space<vmem>>, vector<2x16x128xf32>,
    %c0_34 = arith.constant 0 : index
    %c16_35 = arith.constant 16 : index
    %c0_36 = arith.constant 0 : index
    %66 = vector.load %arg8[%c0_34, %c16_35, %c0_36] : memref<2x48x128xf32, #tpu.memory_space<vmem>>, vector<2x16x128xf32>
    tpu.vector_store %arg8[%c0_34, %c16_35, %c0_36], %55 {strides = array<i32>} : memref<2x48x128xf32, #tpu.memory_space<vmem>>, vector<2x16x128xf32>,
    %67 = vector.shape_cast %63 : vector<32x128xf32> to vector<2x16x128xf32>
    %c0_37 = arith.constant 0 : index
    %c32 = arith.constant 32 : index
    %c0_38 = arith.constant 0 : index
    %68 = vector.load %arg8[%c0_37, %c32, %c0_38] : memref<2x48x128xf32, #tpu.memory_space<vmem>>, vector<2x16x128xf32>
    tpu.vector_store %arg8[%c0_37, %c32, %c0_38], %67 {strides = array<i32>} : memref<2x48x128xf32, #tpu.memory_space<vmem>>, vector<2x16x128xf32>,
    %c0_39 = arith.constant 0 : index
    %c0_40 = arith.constant 0 : index
    %c0_41 = arith.constant 0 : index
    %69 = vector.load %arg8[%c0_39, %c0_40, %c0_41] : memref<2x48x128xf32, #tpu.memory_space<vmem>>, vector<2x48x128xf32>
    %70 = vector.shape_cast %56 : vector<16x48xf32> to vector<1x16x48xf32>
    %71 = vector.broadcast %70 : vector<1x16x48xf32> to vector<2x16x48xf32>
    %cst_42 = arith.constant dense<0.000000e+00> : vector<2x16x128xf32>
    %72 = tpu.matmul %71, %69, %cst_42 {dimension_numbers = #tpu.dot_dimension_numbers<[2], [1], [1], [2], [0, 0, 0, 1, 1, 2], [0], [0]>} : vector<2x16x48xf32>, vector<2x48x128xf32>, vector<2x16x128xf32> -> vector<2x16x128xf32>
    %c0_43 = arith.constant 0 : index
    %c0_44 = arith.constant 0 : index
    %73 = vector.load %arg5[%c0_43, %c0_44] : memref<16x1xf32, #tpu.memory_space<vmem>>, vector<16x1xf32>
    %c0_45 = arith.constant 0 : index
    %c0_46 = arith.constant 0 : index
    %74 = vector.load %arg6[%c0_45, %c0_46] : memref<16x1xf32, #tpu.memory_space<vmem>>, vector<16x1xf32>
    %cst_47 = arith.constant dense<0.000000e+00> : vector<2x16xf32>
    %75 = vector.multi_reduction <add>, %72, %cst_47 [2] : vector<2x16x128xf32> to vector<2x16xf32>
    %76 = vector.shape_cast %75 : vector<2x16xf32> to vector<2x16x1xf32>
    %cst_48 = arith.constant dense<0.000000e+00> : vector<16x1xf32>
    %77 = vector.multi_reduction <add>, %76, %cst_48 [0] : vector<2x16x1xf32> to vector<16x1xf32>
    %78 = vector.shape_cast %77 : vector<16x1xf32> to vector<1x16x1xf32>
    %cst_49 = arith.constant 3.906250e-03 : f32
    %79 = vector.broadcast %cst_49 : f32 to vector<1x16x1xf32>
    %80 = arith.mulf %78, %79 : vector<1x16x1xf32>
    %81 = vector.broadcast %80 : vector<1x16x1xf32> to vector<2x16x128xf32>
    %82 = arith.subf %72, %81 : vector<2x16x128xf32>
    %83 = arith.mulf %82, %82 : vector<2x16x128xf32>
    %cst_50 = arith.constant dense<0.000000e+00> : vector<2x16xf32>
    %84 = vector.multi_reduction <add>, %83, %cst_50 [2] : vector<2x16x128xf32> to vector<2x16xf32>
    %85 = vector.shape_cast %84 : vector<2x16xf32> to vector<2x16x1xf32>
    %cst_51 = arith.constant dense<0.000000e+00> : vector<16x1xf32>
    %86 = vector.multi_reduction <add>, %85, %cst_51 [0] : vector<2x16x1xf32> to vector<16x1xf32>
    %87 = vector.shape_cast %86 : vector<16x1xf32> to vector<1x16x1xf32>
    %cst_52 = arith.constant 3.906250e-03 : f32
    %88 = vector.broadcast %cst_52 : f32 to vector<1x16x1xf32>
    %89 = arith.mulf %87, %88 : vector<1x16x1xf32>
    %cst_53 = arith.constant 9.99999974E-6 : f32
    %90 = vector.broadcast %cst_53 : f32 to vector<1x16x1xf32>
    %91 = arith.addf %89, %90 : vector<1x16x1xf32>
    %92 = math.rsqrt %91 : vector<1x16x1xf32>
    %93 = vector.shape_cast %73 : vector<16x1xf32> to vector<1x16x1xf32>
    %94 = arith.mulf %93, %92 : vector<1x16x1xf32>
    %95 = vector.broadcast %94 : vector<1x16x1xf32> to vector<2x16x128xf32>
    %96 = arith.mulf %82, %95 : vector<2x16x128xf32>
    %97 = vector.shape_cast %74 : vector<16x1xf32> to vector<1x16x1xf32>
    %98 = vector.broadcast %97 : vector<1x16x1xf32> to vector<2x16x128xf32>
    %99 = arith.addf %96, %98 : vector<2x16x128xf32>
    %cst_54 = arith.constant 0.000000e+00 : f32
    %100 = vector.broadcast %cst_54 : f32 to vector<2x16x128xf32>
    %101 = arith.maximumf %99, %100 : vector<2x16x128xf32>
    %c0_55 = arith.constant 0 : index
    %c0_56 = arith.constant 0 : index
    %c0_57 = arith.constant 0 : index
    %102 = vector.load %arg7[%c0_55, %c0_56, %c0_57] : memref<2x16x128xf32, #tpu.memory_space<vmem>>, vector<2x16x128xf32>
    tpu.vector_store %arg7[%c0_55, %c0_56, %c0_57], %101 {strides = array<i32>} : memref<2x16x128xf32, #tpu.memory_space<vmem>>, vector<2x16x128xf32>,
    return
  }
}

</mosaic_0001>

<llo_original>
// kernel: tpu_custom_call.1
$region0: #{tpu_custom_call.1}
  #allocation0 [shape = 'u32[]', space=smem, size = 0x4, offset = 0x4, fixed_abs, tag = 'smem constant byte address 0x4 - core index']
  #allocation1 [shape = 'u32[144,128]{1,0:T(1,128)}', space=vmem, size = 0x12000, scoped, tag = 'internal scratch']
  #allocation2 [shape = 'f32[2,48,128]{2,1,0:T(8,128)}', space=vmem, size = 0xc000, scoped, tag = 'scratch operand']
  %s0 = inlined_call_operand.vmem [shape: f32[2,8,128], index: 0, kind: input, shape index: {}]
  %s1 = inlined_call_operand.vmem [shape: f32[16,24], index: 1, kind: input, shape index: {}]
  %s2 = inlined_call_operand.vmem [shape: f32[16,48], index: 2, kind: input, shape index: {}]
  %s3 = inlined_call_operand.vmem [shape: f32[16,1], index: 3, kind: input, shape index: {}]
  %s4 = inlined_call_operand.vmem [shape: f32[16,1], index: 4, kind: input, shape index: {}]
  %s5 = inlined_call_operand.vmem [shape: f32[16,1], index: 5, kind: input, shape index: {}]
  %s6 = inlined_call_operand.vmem [shape: f32[16,1], index: 6, kind: input, shape index: {}]
  %s7 = inlined_call_operand.hbm [shape: f32[2,16,128], index: 7, kind: output, shape index: {}]
  %s8 = sld [smem:[#allocation0]]
  $region38: #{tpu_custom_call.1} parent=0
    _
  %s10 = ssub.s32 1, %s8
  %s11 = scalar_select 0, %s10, %s8
  $region1: #{tpu_custom_call.1} parent=0
    #allocation3 [shape = 'u8[16384]{0}', space=vmem, size = 0x4000, scoped, tag = 'output window, operand 0, single buffered']
    #allocation4 [shape = 's32[1]{0}', space=sflag, size = 0x4, scoped, tag = 'scoped memory for tpu_custom_call.1']
    %12 = vsyncpa [#allocation4], 0
    // Predicated region
    $region2: #{tpu_custom_call.1} parent=1 // pred_check
      _
    $region3: #{tpu_custom_call.1} parent=1 // pred_check_branch
      %14 = sbr.rel (0) target = $region5
    $region4: #{tpu_custom_call.1} parent=1 // pred_region
      _
    $region5: #{tpu_custom_call.1} parent=1 // pred_fallthru
      _
    // Predicated region
    $region6: #{tpu_custom_call.1} parent=1 // pred_check
      _
    $region7: #{tpu_custom_call.1} parent=1 // pred_check_branch
      %16 = sbr.rel (0) target = $region9
    $region8: #{tpu_custom_call.1} parent=1 // pred_region
      _
    $region9: #{tpu_custom_call.1} parent=1 // pred_fallthru
      _
    // Predicated region
    $region10: #{tpu_custom_call.1} parent=1 // pred_check
      _
    $region11: #{tpu_custom_call.1} parent=1 // pred_check_branch
      %18 = sbr.rel (0) target = $region13
    $region12: #{tpu_custom_call.1} parent=1 // pred_region
      _
    $region13: #{tpu_custom_call.1} parent=1 // pred_fallthru
      _
    // Predicated region
    $region14: #{tpu_custom_call.1} parent=1 // pred_check
      _
    $region15: #{tpu_custom_call.1} parent=1 // pred_check_branch
      %20 = sbr.rel (0) target = $region17
    $region16: #{tpu_custom_call.1} parent=1 // pred_region
      _
    $region17: #{tpu_custom_call.1} parent=1 // pred_fallthru
      _
    // Predicated region
    $region18: #{tpu_custom_call.1} parent=1 // pred_check
      _
    $region19: #{tpu_custom_call.1} parent=1 // pred_check_branch
      %22 = sbr.rel (0) target = $region21
    $region20: #{tpu_custom_call.1} parent=1 // pred_region
      _
    $region21: #{tpu_custom_call.1} parent=1 // pred_fallthru
      _
    // Predicated region
    $region22: #{tpu_custom_call.1} parent=1 // pred_check
      _
    $region23: #{tpu_custom_call.1} parent=1 // pred_check_branch
      %24 = sbr.rel (0) target = $region25
    $region24: #{tpu_custom_call.1} parent=1 // pred_region
      _
    $region25: #{tpu_custom_call.1} parent=1 // pred_fallthru
      _
    // Predicated region
    $region26: #{tpu_custom_call.1} parent=1 // pred_check
      _
    $region27: #{tpu_custom_call.1} parent=1 // pred_check_branch
      %26 = sbr.rel (0) target = $region29
    $region28: #{tpu_custom_call.1} parent=1 // pred_region
      _
    $region29: #{tpu_custom_call.1} parent=1 // pred_fallthru
      _
    %v27 = vlaneseq
    %v28 = vand.u32 %v27, 127
    %vm29 = vcmp.ne.s32.totalorder %v28, 0
    %v30 = vsel %vm29, 1, 0
    %v31 = vcvt.s32.f32 %v30
    %vm32 = vcmp.ne.s32.totalorder %v28, 127
    %v33 = vsel %vm32, 1, 0
    %v34 = vcvt.s32.f32 %v33
    %v35 = vld [vmem:[%s0] sm:$0xff]
    %v36 = vld [vmem:[%s0 + $0x8] sm:$0xff]
    %v37 = vld [vmem:[%s1] sm:$0xff]
    %v38 = vld [vmem:[%s1 + $0x8] sm:$0xff]
    %39 = vrot.lane.b32.xlu0 %v35, 1
    %v40 = vpop.permute.xlu0 %39
    %41 = vrot.lane.b32.xlu0 %v36, 1
    %v42 = vpop.permute.xlu0 %41
    %v43 = vmul.f32 %v40, %v31
    %v44 = vmul.f32 %v42, %v31
    %45 = vrot.lane.b32.xlu0 %v35, 127
    %v46 = vpop.permute.xlu0 %45
    %47 = vrot.lane.b32.xlu0 %v36, 127
    %v48 = vpop.permute.xlu0 %47
    %v49 = vmul.f32 %v46, %v34
    %v50 = vmul.f32 %v48, %v34
    %51 = vst [vmem:[#allocation2] sm:$0xff] %v43
    %52 = vst [vmem:[#allocation2 + $0x30] sm:$0xff] %v44
    %53 = vst [vmem:[#allocation2 + $0x8] sm:$0xff] %v35
    %54 = vst [vmem:[#allocation2 + $0x38] sm:$0xff] %v36
    %55 = vst [vmem:[#allocation2 + $0x10] sm:$0xff] %v49
    %56 = vst [vmem:[#allocation2 + $0x40] sm:$0xff] %v50
    %v57 = vld [vmem:[#allocation2] sm:$0xff]
    %v58 = vld [vmem:[#allocation2 + $0x8] sm:$0xff]
    %v59 = vld [vmem:[#allocation2 + $0x10] sm:$0xff]
    %v60 = vld [vmem:[#allocation2 + $0x30] sm:$0xff]
    %v61 = vld [vmem:[#allocation2 + $0x38] sm:$0xff]
    %v62 = vld [vmem:[#allocation2 + $0x40] sm:$0xff]
    %vm63 = vcmask 195584
    %v65 = vsel %vm63, %v37, 0
    %v68 = vsel %vm63, %v38, 0
    %70 = vmatprep.subr.mxu0 0.0
    %71 = vmatpush1.msra.mxu0 0.0
    %72 = vmatprep.subr.mxu0 0.0
    %73 = vmatpush1.msra.mxu0 0.0
    %74 = vmatprep.subr.mxu0 0.0
    %75 = vmatpush1.msra.mxu0 0.0
    %76 = vmatprep.subr.mxu0 0.0
    %77 = vmatpush1.msra.mxu0 0.0
    %78 = vmatprep.subr.mxu0 0.0
    %79 = vmatpush1.msra.mxu0 0.0
    %80 = vmatprep.subr.mxu0 0.0
    %81 = vmatpush1.msra.mxu0 0.0
    %82 = vmatprep.subr.mxu0 0.0
    %83 = vmatpush1.msra.mxu0 0.0
    %84 = vmatprep.subr.mxu0 0.0
    %85 = vmatpush1.msra.mxu0 0.0
    %86 = vmatprep.subr.mxu0 0.0
    %87 = vmatpush1.msra.mxu0 0.0
    %88 = vmatprep.subr.mxu0 0.0
    %89 = vmatpush1.msra.mxu0 0.0
    %90 = vmatprep.subr.mxu0 0.0
    %91 = vmatpush1.msra.mxu0 0.0
    %92 = vmatprep.subr.mxu0 0.0
    %93 = vmatpush1.msra.mxu0 0.0
    %94 = vmatprep.subr.mxu0 0.0
    %95 = vmatpush1.msra.mxu0 0.0
    %96 = vmatprep.subr.mxu0 0.0
    %97 = vmatpush1.msra.mxu0 %v59
    %98 = vmatprep.subr.mxu0 0.0
    %99 = vmatpush1.msra.mxu0 %v58
    %100 = vmatprep.subr.mxu0 0.0
    %101 = vmatpush1.msra.mxu0 %v57
    %102 = vmatprep.subr.mxu0 0.0
    %103 = vmatpush2.msra.mxu0 0.0
    %104 = vmatprep.subr.mxu0 0.0
    %105 = vmatpush2.msra.mxu0 0.0
    %106 = vmatprep.subr.mxu0 0.0
    %107 = vmatpush2.msra.mxu0 0.0
    %108 = vmatprep.subr.mxu0 0.0
    %109 = vmatpush2.msra.mxu0 0.0
    %110 = vmatprep.subr.mxu0 0.0
    %111 = vmatpush2.msra.mxu0 0.0
    %112 = vmatprep.subr.mxu0 0.0
    %113 = vmatpush2.msra.mxu0 0.0
    %114 = vmatprep.subr.mxu0 0.0
    %115 = vmatpush2.msra.mxu0 0.0
    %116 = vmatprep.subr.mxu0 0.0
    %117 = vmatpush2.msra.mxu0 0.0
    %118 = vmatprep.subr.mxu0 0.0
    %119 = vmatpush2.msra.mxu0 0.0
    %120 = vmatprep.subr.mxu0 0.0
    %121 = vmatpush2.msra.mxu0 0.0
    %122 = vmatprep.subr.mxu0 0.0
    %123 = vmatpush2.msra.mxu0 0.0
    %124 = vmatprep.subr.mxu0 0.0
    %125 = vmatpush2.msra.mxu0 0.0
    %126 = vmatprep.subr.mxu0 0.0
    %127 = vmatpush2.msra.mxu0 0.0
    %128 = vmatprep.subr.mxu0 0.0
    %129 = vmatpush2.msra.mxu0 0.0
    %130 = vmatprep.subr.mxu0 0.0
    %131 = vmatpush2.msra.mxu0 0.0
    %132 = vmatprep.subr.mxu0 0.0
    %133 = vmatpush2.msra.mxu0 0.0
    %134 = vmatprep.mubr.f32.mxu0 0.0
    %135 = vmatmul.mubr.f32.gmra.mxu0 %v65
    %v136 = vpop.f32.mrf.mxu0
    %v137 = vadd.f32 0.0, %v136
    %v138 = vpop.f32.mrf.mxu0
    %139 = vmatprep.mubr.f32.mxu0 0.0
    %140 = vmatmul.mubr.f32.gmra.mxu0 %v68
    %v141 = vpop.f32.mrf.mxu0
    %v142 = vadd.f32 0.0, %v141
    %v143 = vpop.f32.mrf.mxu0
    %144 = vdwg.mxu0
    %145 = vmatprep.subr.mxu0 0.0
    %146 = vmatpush1.msra.mxu0 0.0
    %147 = vmatprep.subr.mxu0 0.0
    %148 = vmatpush1.msra.mxu0 0.0
    %149 = vmatprep.subr.mxu0 0.0
    %150 = vmatpush1.msra.mxu0 0.0
    %151 = vmatprep.subr.mxu0 0.0
    %152 = vmatpush1.msra.mxu0 0.0
    %153 = vmatprep.subr.mxu0 0.0
    %154 = vmatpush1.msra.mxu0 0.0
    %155 = vmatprep.subr.mxu0 0.0
    %156 = vmatpush1.msra.mxu0 0.0
    %157 = vmatprep.subr.mxu0 0.0
    %158 = vmatpush1.msra.mxu0 0.0
    %159 = vmatprep.subr.mxu0 0.0
    %160 = vmatpush1.msra.mxu0 0.0
    %161 = vmatprep.subr.mxu0 0.0
    %162 = vmatpush1.msra.mxu0 0.0
    %163 = vmatprep.subr.mxu0 0.0
    %164 = vmatpush1.msra.mxu0 0.0
    %165 = vmatprep.subr.mxu0 0.0
    %166 = vmatpush1.msra.mxu0 0.0
    %167 = vmatprep.subr.mxu0 0.0
    %168 = vmatpush1.msra.mxu0 0.0
    %169 = vmatprep.subr.mxu0 0.0
    %170 = vmatpush1.msra.mxu0 0.0
    %171 = vmatprep.subr.mxu0 0.0
    %172 = vmatpush1.msra.mxu0 %v62
    %173 = vmatprep.subr.mxu0 0.0
    %174 = vmatpush1.msra.mxu0 %v61
    %175 = vmatprep.subr.mxu0 0.0
    %176 = vmatpush1.msra.mxu0 %v60
    %177 = vmatprep.subr.mxu0 0.0
    %178 = vmatpush2.msra.mxu0 0.0
    %179 = vmatprep.subr.mxu0 0.0
    %180 = vmatpush2.msra.mxu0 0.0
    %181 = vmatprep.subr.mxu0 0.0
    %182 = vmatpush2.msra.mxu0 0.0
    %183 = vmatprep.subr.mxu0 0.0
    %184 = vmatpush2.msra.mxu0 0.0
    %185 = vmatprep.subr.mxu0 0.0
    %186 = vmatpush2.msra.mxu0 0.0
    %187 = vmatprep.subr.mxu0 0.0
    %188 = vmatpush2.msra.mxu0 0.0
    %189 = vmatprep.subr.mxu0 0.0
    %190 = vmatpush2.msra.mxu0 0.0
    %191 = vmatprep.subr.mxu0 0.0
    %192 = vmatpush2.msra.mxu0 0.0
    %193 = vmatprep.subr.mxu0 0.0
    %194 = vmatpush2.msra.mxu0 0.0
    %195 = vmatprep.subr.mxu0 0.0
    %196 = vmatpush2.msra.mxu0 0.0
    %197 = vmatprep.subr.mxu0 0.0
    %198 = vmatpush2.msra.mxu0 0.0
    %199 = vmatprep.subr.mxu0 0.0
    %200 = vmatpush2.msra.mxu0 0.0
    %201 = vmatprep.subr.mxu0 0.0
    %202 = vmatpush2.msra.mxu0 0.0
    %203 = vmatprep.subr.mxu0 0.0
    %204 = vmatpush2.msra.mxu0 0.0
    %205 = vmatprep.subr.mxu0 0.0
    %206 = vmatpush2.msra.mxu0 0.0
    %207 = vmatprep.subr.mxu0 0.0
    %208 = vmatpush2.msra.mxu0 0.0
    %209 = vmatprep.mubr.f32.mxu0 0.0
    %210 = vmatmul.mubr.f32.gmra.mxu0 %v65
    %v211 = vpop.f32.mrf.mxu0
    %v212 = vadd.f32 0.0, %v211
    %v213 = vpop.f32.mrf.mxu0
    %214 = vmatprep.mubr.f32.mxu0 0.0
    %215 = vmatmul.mubr.f32.gmra.mxu0 %v68
    %v216 = vpop.f32.mrf.mxu0
    %v217 = vadd.f32 0.0, %v216
    %v218 = vpop.f32.mrf.mxu0
    %219 = vdwg.mxu0
    %v220 = vld [vmem:[%s3] sm:$0xff]
    %v221 = vld [vmem:[%s3 + $0x8] sm:$0xff]
    %v222 = vld [vmem:[%s4] sm:$0xff]
    %v223 = vld [vmem:[%s4 + $0x8] sm:$0xff]
    %224 = vadd.xlane.f32.xlu0 %v137
    %v225 = vpop.xlane.xlu0 %224
    %226 = vadd.xlane.f32.xlu0 %v142
    %v227 = vpop.xlane.xlu0 %226
    %228 = vadd.xlane.f32.xlu0 %v212
    %v229 = vpop.xlane.xlu0 %228
    %230 = vadd.xlane.f32.xlu0 %v217
    %v231 = vpop.xlane.xlu0 %230
    %v232 = vadd.f32 %v225, %v229
    %v233 = vadd.f32 %v227, %v231
    %v234 = vmul.f32 %v232, 0.00390625
    %v235 = vmul.f32 %v233, 0.00390625
    %v236 = vsub.f32 %v137, %v234
    %v237 = vsub.f32 %v142, %v235
    %v238 = vsub.f32 %v212, %v234
    %v239 = vsub.f32 %v217, %v235
    %v240 = vmul.f32 %v236, %v236
    %v241 = vmul.f32 %v237, %v237
    %v242 = vmul.f32 %v238, %v238
    %v243 = vmul.f32 %v239, %v239
    %244 = vadd.xlane.f32.xlu0 %v240
    %v245 = vpop.xlane.xlu0 %244
    %246 = vadd.xlane.f32.xlu0 %v241
    %v247 = vpop.xlane.xlu0 %246
    %248 = vadd.xlane.f32.xlu0 %v242
    %v249 = vpop.xlane.xlu0 %248
    %250 = vadd.xlane.f32.xlu0 %v243
    %v251 = vpop.xlane.xlu0 %250
    %v252 = vadd.f32 %v245, %v249
    %v253 = vadd.f32 %v247, %v251
    %v254 = vmul.f32 %v252, 0.00390625
    %v255 = vmul.f32 %v253, 0.00390625
    %v256 = vadd.f32 %v254, 1e-05
    %v257 = vadd.f32 %v255, 1e-05
    %v258 = vrsqrt.pop %v256
    %v259 = vrsqrt.pop %v257
    %v260 = vmul.f32 %v220, %v258
    %v261 = vmul.f32 %v221, %v259
    %263 = vset.pattern.permute.xlu0 0
    %264 = vperm.xlu0 %263, %v260
    %v265 = vpop.permute.xlu0 %264
    %268 = vset.pattern.permute.xlu0 0
    %269 = vperm.xlu0 %268, %v261
    %v270 = vpop.permute.xlu0 %269
    %v272 = vmul.f32 %v236, %v265
    %v273 = vmul.f32 %v237, %v270
    %v274 = vmul.f32 %v238, %v265
    %v275 = vmul.f32 %v239, %v270
    %277 = vset.pattern.permute.xlu0 0
    %278 = vperm.xlu0 %277, %v222
    %v279 = vpop.permute.xlu0 %278
    %282 = vset.pattern.permute.xlu0 0
    %283 = vperm.xlu0 %282, %v223
    %v284 = vpop.permute.xlu0 %283
    %v286 = vadd.f32 %v272, %v279
    %v287 = vadd.f32 %v273, %v284
    %v288 = vadd.f32 %v274, %v279
    %v289 = vadd.f32 %v275, %v284
    %v290 = vmax.f32 %v286, 0.0
    %v291 = vmax.f32 %v287, 0.0
    %v292 = vmax.f32 %v288, 0.0
    %v293 = vmax.f32 %v289, 0.0
    %v294 = vld [vmem:[%s2] sm:$0xff]
    %v295 = vld [vmem:[%s2 + $0x8] sm:$0xff]
    %296 = vrot.lane.b32.xlu0 %v290, 1
    %v297 = vpop.permute.xlu0 %296
    %298 = vrot.lane.b32.xlu0 %v291, 1
    %v299 = vpop.permute.xlu0 %298
    %300 = vrot.lane.b32.xlu0 %v292, 1
    %v301 = vpop.permute.xlu0 %300
    %302 = vrot.lane.b32.xlu0 %v293, 1
    %v303 = vpop.permute.xlu0 %302
    %v304 = vmul.f32 %v297, %v31
    %v305 = vmul.f32 %v299, %v31
    %v306 = vmul.f32 %v301, %v31
    %v307 = vmul.f32 %v303, %v31
    %308 = vrot.lane.b32.xlu0 %v290, 127
    %v309 = vpop.permute.xlu0 %308
    %310 = vrot.lane.b32.xlu0 %v291, 127
    %v311 = vpop.permute.xlu0 %310
    %312 = vrot.lane.b32.xlu0 %v292, 127
    %v313 = vpop.permute.xlu0 %312
    %314 = vrot.lane.b32.xlu0 %v293, 127
    %v315 = vpop.permute.xlu0 %314
    %v316 = vmul.f32 %v309, %v34
    %v317 = vmul.f32 %v311, %v34
    %v318 = vmul.f32 %v313, %v34
    %v319 = vmul.f32 %v315, %v34
    %320 = vst [vmem:[#allocation2] sm:$0xff] %v304
    %321 = vst [vmem:[#allocation2 + $0x8] sm:$0xff] %v305
    %322 = vst [vmem:[#allocation2 + $0x30] sm:$0xff] %v306
    %323 = vst [vmem:[#allocation2 + $0x38] sm:$0xff] %v307
    %324 = vst [vmem:[#allocation2 + $0x10] sm:$0xff] %v290
    %325 = vst [vmem:[#allocation2 + $0x18] sm:$0xff] %v291
    %326 = vst [vmem:[#allocation2 + $0x40] sm:$0xff] %v292
    %327 = vst [vmem:[#allocation2 + $0x48] sm:$0xff] %v293
    %328 = vst [vmem:[#allocation2 + $0x20] sm:$0xff] %v316
    %329 = vst [vmem:[#allocation2 + $0x28] sm:$0xff] %v317
    %330 = vst [vmem:[#allocation2 + $0x50] sm:$0xff] %v318
    %331 = vst [vmem:[#allocation2 + $0x58] sm:$0xff] %v319
    %v332 = vld [vmem:[#allocation2] sm:$0xff]
    %v333 = vld [vmem:[#allocation2 + $0x8] sm:$0xff]
    %v334 = vld [vmem:[#allocation2 + $0x10] sm:$0xff]
    %v335 = vld [vmem:[#allocation2 + $0x18] sm:$0xff]
    %v336 = vld [vmem:[#allocation2 + $0x20] sm:$0xff]
    %v337 = vld [vmem:[#allocation2 + $0x28] sm:$0xff]
    %v338 = vld [vmem:[#allocation2 + $0x30] sm:$0xff]
    %v339 = vld [vmem:[#allocation2 + $0x38] sm:$0xff]
    %v340 = vld [vmem:[#allocation2 + $0x40] sm:$0xff]
    %v341 = vld [vmem:[#allocation2 + $0x48] sm:$0xff]
    %v342 = vld [vmem:[#allocation2 + $0x50] sm:$0xff]
    %v343 = vld [vmem:[#allocation2 + $0x58] sm:$0xff]
    %vm344 = vcmask 392192
    %v346 = vsel %vm344, %v294, 0
    %v349 = vsel %vm344, %v295, 0
    %351 = vmatprep.subr.mxu0 0.0
    %352 = vmatpush1.msra.mxu0 0.0
    %353 = vmatprep.subr.mxu0 0.0
    %354 = vmatpush1.msra.mxu0 0.0
    %355 = vmatprep.subr.mxu0 0.0
    %356 = vmatpush1.msra.mxu0 0.0
    %357 = vmatprep.subr.mxu0 0.0
    %358 = vmatpush1.msra.mxu0 0.0
    %359 = vmatprep.subr.mxu0 0.0
    %360 = vmatpush1.msra.mxu0 0.0
    %361 = vmatprep.subr.mxu0 0.0
    %362 = vmatpush1.msra.mxu0 0.0
    %363 = vmatprep.subr.mxu0 0.0
    %364 = vmatpush1.msra.mxu0 0.0
    %365 = vmatprep.subr.mxu0 0.0
    %366 = vmatpush1.msra.mxu0 0.0
    %367 = vmatprep.subr.mxu0 0.0
    %368 = vmatpush1.msra.mxu0 0.0
    %369 = vmatprep.subr.mxu0 0.0
    %370 = vmatpush1.msra.mxu0 0.0
    %371 = vmatprep.subr.mxu0 0.0
    %372 = vmatpush1.msra.mxu0 %v337
    %373 = vmatprep.subr.mxu0 0.0
    %374 = vmatpush1.msra.mxu0 %v336
    %375 = vmatprep.subr.mxu0 0.0
    %376 = vmatpush1.msra.mxu0 %v335
    %377 = vmatprep.subr.mxu0 0.0
    %378 = vmatpush1.msra.mxu0 %v334
    %379 = vmatprep.subr.mxu0 0.0
    %380 = vmatpush1.msra.mxu0 %v333
    %381 = vmatprep.subr.mxu0 0.0
    %382 = vmatpush1.msra.mxu0 %v332
    %383 = vmatprep.subr.mxu0 0.0
    %384 = vmatpush2.msra.mxu0 0.0
    %385 = vmatprep.subr.mxu0 0.0
    %386 = vmatpush2.msra.mxu0 0.0
    %387 = vmatprep.subr.mxu0 0.0
    %388 = vmatpush2.msra.mxu0 0.0
    %389 = vmatprep.subr.mxu0 0.0
    %390 = vmatpush2.msra.mxu0 0.0
    %391 = vmatprep.subr.mxu0 0.0
    %392 = vmatpush2.msra.mxu0 0.0
    %393 = vmatprep.subr.mxu0 0.0
    %394 = vmatpush2.msra.mxu0 0.0
    %395 = vmatprep.subr.mxu0 0.0
    %396 = vmatpush2.msra.mxu0 0.0
    %397 = vmatprep.subr.mxu0 0.0
    %398 = vmatpush2.msra.mxu0 0.0
    %399 = vmatprep.subr.mxu0 0.0
    %400 = vmatpush2.msra.mxu0 0.0
    %401 = vmatprep.subr.mxu0 0.0
    %402 = vmatpush2.msra.mxu0 0.0
    %403 = vmatprep.subr.mxu0 0.0
    %404 = vmatpush2.msra.mxu0 0.0
    %405 = vmatprep.subr.mxu0 0.0
    %406 = vmatpush2.msra.mxu0 0.0
    %407 = vmatprep.subr.mxu0 0.0
    %408 = vmatpush2.msra.mxu0 0.0
    %409 = vmatprep.subr.mxu0 0.0
    %410 = vmatpush2.msra.mxu0 0.0
    %411 = vmatprep.subr.mxu0 0.0
    %412 = vmatpush2.msra.mxu0 0.0
    %413 = vmatprep.subr.mxu0 0.0
    %414 = vmatpush2.msra.mxu0 0.0
    %415 = vmatprep.mubr.f32.mxu0 0.0
    %416 = vmatmul.mubr.f32.gmra.mxu0 %v346
    %v417 = vpop.f32.mrf.mxu0
    %v418 = vadd.f32 0.0, %v417
    %v419 = vpop.f32.mrf.mxu0
    %420 = vmatprep.mubr.f32.mxu0 0.0
    %421 = vmatmul.mubr.f32.gmra.mxu0 %v349
    %v422 = vpop.f32.mrf.mxu0
    %v423 = vadd.f32 0.0, %v422
    %v424 = vpop.f32.mrf.mxu0
    %425 = vdwg.mxu0
    %426 = vmatprep.subr.mxu0 0.0
    %427 = vmatpush1.msra.mxu0 0.0
    %428 = vmatprep.subr.mxu0 0.0
    %429 = vmatpush1.msra.mxu0 0.0
    %430 = vmatprep.subr.mxu0 0.0
    %431 = vmatpush1.msra.mxu0 0.0
    %432 = vmatprep.subr.mxu0 0.0
    %433 = vmatpush1.msra.mxu0 0.0
    %434 = vmatprep.subr.mxu0 0.0
    %435 = vmatpush1.msra.mxu0 0.0
    %436 = vmatprep.subr.mxu0 0.0
    %437 = vmatpush1.msra.mxu0 0.0
    %438 = vmatprep.subr.mxu0 0.0
    %439 = vmatpush1.msra.mxu0 0.0
    %440 = vmatprep.subr.mxu0 0.0
    %441 = vmatpush1.msra.mxu0 0.0
    %442 = vmatprep.subr.mxu0 0.0
    %443 = vmatpush1.msra.mxu0 0.0
    %444 = vmatprep.subr.mxu0 0.0
    %445 = vmatpush1.msra.mxu0 0.0
    %446 = vmatprep.subr.mxu0 0.0
    %447 = vmatpush1.msra.mxu0 %v343
    %448 = vmatprep.subr.mxu0 0.0
    %449 = vmatpush1.msra.mxu0 %v342
    %450 = vmatprep.subr.mxu0 0.0
    %451 = vmatpush1.msra.mxu0 %v341
    %452 = vmatprep.subr.mxu0 0.0
    %453 = vmatpush1.msra.mxu0 %v340
    %454 = vmatprep.subr.mxu0 0.0
    %455 = vmatpush1.msra.mxu0 %v339
    %456 = vmatprep.subr.mxu0 0.0
    %457 = vmatpush1.msra.mxu0 %v338
    %458 = vmatprep.subr.mxu0 0.0
    %459 = vmatpush2.msra.mxu0 0.0
    %460 = vmatprep.subr.mxu0 0.0
    %461 = vmatpush2.msra.mxu0 0.0
    %462 = vmatprep.subr.mxu0 0.0
    %463 = vmatpush2.msra.mxu0 0.0
    %464 = vmatprep.subr.mxu0 0.0
    %465 = vmatpush2.msra.mxu0 0.0
    %466 = vmatprep.subr.mxu0 0.0
    %467 = vmatpush2.msra.mxu0 0.0
    %468 = vmatprep.subr.mxu0 0.0
    %469 = vmatpush2.msra.mxu0 0.0
    %470 = vmatprep.subr.mxu0 0.0
    %471 = vmatpush2.msra.mxu0 0.0
    %472 = vmatprep.subr.mxu0 0.0
    %473 = vmatpush2.msra.mxu0 0.0
    %474 = vmatprep.subr.mxu0 0.0
    %475 = vmatpush2.msra.mxu0 0.0
    %476 = vmatprep.subr.mxu0 0.0
    %477 = vmatpush2.msra.mxu0 0.0
    %478 = vmatprep.subr.mxu0 0.0
    %479 = vmatpush2.msra.mxu0 0.0
    %480 = vmatprep.subr.mxu0 0.0
    %481 = vmatpush2.msra.mxu0 0.0
    %482 = vmatprep.subr.mxu0 0.0
    %483 = vmatpush2.msra.mxu0 0.0
    %484 = vmatprep.subr.mxu0 0.0
    %485 = vmatpush2.msra.mxu0 0.0
    %486 = vmatprep.subr.mxu0 0.0
    %487 = vmatpush2.msra.mxu0 0.0
    %488 = vmatprep.subr.mxu0 0.0
    %489 = vmatpush2.msra.mxu0 0.0
    %490 = vmatprep.mubr.f32.mxu0 0.0
    %491 = vmatmul.mubr.f32.gmra.mxu0 %v346
    %v492 = vpop.f32.mrf.mxu0
    %v493 = vadd.f32 0.0, %v492
    %v494 = vpop.f32.mrf.mxu0
    %495 = vmatprep.mubr.f32.mxu0 0.0
    %496 = vmatmul.mubr.f32.gmra.mxu0 %v349
    %v497 = vpop.f32.mrf.mxu0
    %v498 = vadd.f32 0.0, %v497
    %v499 = vpop.f32.mrf.mxu0
    %500 = vdwg.mxu0
    %v501 = vld [vmem:[%s5] sm:$0xff]
    %v502 = vld [vmem:[%s5 + $0x8] sm:$0xff]
    %v503 = vld [vmem:[%s6] sm:$0xff]
    %v504 = vld [vmem:[%s6 + $0x8] sm:$0xff]
    %505 = vadd.xlane.f32.xlu0 %v418
    %v506 = vpop.xlane.xlu0 %505
    %507 = vadd.xlane.f32.xlu0 %v423
    %v508 = vpop.xlane.xlu0 %507
    %509 = vadd.xlane.f32.xlu0 %v493
    %v510 = vpop.xlane.xlu0 %509
    %511 = vadd.xlane.f32.xlu0 %v498
    %v512 = vpop.xlane.xlu0 %511
    %v513 = vadd.f32 %v506, %v510
    %v514 = vadd.f32 %v508, %v512
    %v515 = vmul.f32 %v513, 0.00390625
    %v516 = vmul.f32 %v514, 0.00390625
    %v517 = vsub.f32 %v418, %v515
    %v518 = vsub.f32 %v423, %v516
    %v519 = vsub.f32 %v493, %v515
    %v520 = vsub.f32 %v498, %v516
    %v521 = vmul.f32 %v517, %v517
    %v522 = vmul.f32 %v518, %v518
    %v523 = vmul.f32 %v519, %v519
    %v524 = vmul.f32 %v520, %v520
    %525 = vadd.xlane.f32.xlu0 %v521
    %v526 = vpop.xlane.xlu0 %525
    %527 = vadd.xlane.f32.xlu0 %v522
    %v528 = vpop.xlane.xlu0 %527
    %529 = vadd.xlane.f32.xlu0 %v523
    %v530 = vpop.xlane.xlu0 %529
    %531 = vadd.xlane.f32.xlu0 %v524
    %v532 = vpop.xlane.xlu0 %531
    %v533 = vadd.f32 %v526, %v530
    %v534 = vadd.f32 %v528, %v532
    %v535 = vmul.f32 %v533, 0.00390625
    %v536 = vmul.f32 %v534, 0.00390625
    %v537 = vadd.f32 %v535, 1e-05
    %v538 = vadd.f32 %v536, 1e-05
    %v539 = vrsqrt.pop %v537
    %v540 = vrsqrt.pop %v538
    %v541 = vmul.f32 %v501, %v539
    %v542 = vmul.f32 %v502, %v540
    %544 = vset.pattern.permute.xlu0 0
    %545 = vperm.xlu0 %544, %v541
    %v546 = vpop.permute.xlu0 %545
    %549 = vset.pattern.permute.xlu0 0
    %550 = vperm.xlu0 %549, %v542
    %v551 = vpop.permute.xlu0 %550
    %v553 = vmul.f32 %v517, %v546
    %v554 = vmul.f32 %v518, %v551
    %v555 = vmul.f32 %v519, %v546
    %v556 = vmul.f32 %v520, %v551
    %558 = vset.pattern.permute.xlu0 0
    %559 = vperm.xlu0 %558, %v503
    %v560 = vpop.permute.xlu0 %559
    %563 = vset.pattern.permute.xlu0 0
    %564 = vperm.xlu0 %563, %v504
    %v565 = vpop.permute.xlu0 %564
    %v567 = vadd.f32 %v553, %v560
    %v568 = vadd.f32 %v554, %v565
    %v569 = vadd.f32 %v555, %v560
    %v570 = vadd.f32 %v556, %v565
    %v571 = vmax.f32 %v567, 0.0
    %v572 = vmax.f32 %v568, 0.0
    %v573 = vmax.f32 %v569, 0.0
    %v574 = vmax.f32 %v570, 0.0
    %575 = vst [vmem:[#allocation3] sm:$0xff] %v571
    %576 = vst [vmem:[#allocation3 + $0x8] sm:$0xff] %v572
    %577 = vst [vmem:[#allocation3 + $0x10] sm:$0xff] %v573
    %578 = vst [vmem:[#allocation3 + $0x18] sm:$0xff] %v574
    // Predicated region
    $region30: #{tpu_custom_call.1} parent=1 // pred_check
      _
    $region31: #{tpu_custom_call.1} parent=1 // pred_check_branch
      %580 = sbr.rel (0) target = $region33
    $region32: #{tpu_custom_call.1} parent=1 // pred_region
      %s582 = ssub.s32 512, 512
      %583 = vsyncadd [#allocation4], %s582
      %s584 = sshll.u32 [#allocation3], 4
      %s585 = int_to_ptr.vmem [resolvable:$true] %s584
      %590 = dma.vmem_to_hbm [thread:$0]  %s585, 512, %s7, [#allocation4], 128, 128, 8
    $region33: #{tpu_custom_call.1} parent=1 // pred_fallthru
      _
    // Predicated region
    $region34: #{tpu_custom_call.1} parent=1 // pred_check
      _
    $region35: #{tpu_custom_call.1} parent=1 // pred_check_branch
      %592 = sbr.rel (0) target = $region37
    $region36: #{tpu_custom_call.1} parent=1 // pred_region
      %593 = dma.done [#allocation4], 512
    $region37: #{tpu_custom_call.1} parent=1 // pred_fallthru
      _
    %594 = vsyncpa [#allocation4], 1

</llo_original>
